<compile_context>
chip_gen: v7x
topology: tpu7x:2x2x1
jax: 0.10.0
libtpu: 0.0.40
codegen_flags: <defaults>
</compile_context>

<pallas_src>
import functools
import numpy as np

import jax
import jax.numpy as jnp
from jax import lax
from jax.experimental import pallas as pl
from jax.experimental.pallas import tpu as pltpu


# ----------------------------------------------------------------------------
# Fused Pallas kernels:  out = act( (A @ B) + bias [+ residual] )
# ----------------------------------------------------------------------------
def _matmul_kernel(*refs, relu, has_res):
    """Multi-step reduction over the K grid axis (f32 accumulator scratch)."""
    if has_res:
        a_ref, b_ref, bias_ref, res_ref, o_ref, acc_ref = refs
    else:
        a_ref, b_ref, bias_ref, o_ref, acc_ref = refs
        res_ref = None

    @pl.when(pl.program_id(2) == 0)
    def _():
        acc_ref[...] = jnp.zeros_like(acc_ref)

    acc_ref[...] += jnp.dot(a_ref[...], b_ref[...],
                            preferred_element_type=jnp.float32)

    @pl.when(pl.program_id(2) == pl.num_programs(2) - 1)
    def _():
        y = acc_ref[...] + bias_ref[...]
        if has_res:
            y = y + res_ref[...].astype(jnp.float32)
        if relu:
            y = jnp.maximum(y, 0.0)
        o_ref[...] = y.astype(o_ref.dtype)


def _matmul_kernel_single_k(*refs, relu, has_res):
    """K fits in one tile: no accumulator scratch, epilogue applied inline."""
    if has_res:
        a_ref, b_ref, bias_ref, res_ref, o_ref = refs
    else:
        a_ref, b_ref, bias_ref, o_ref = refs
        res_ref = None
    y = jnp.dot(a_ref[...], b_ref[...], preferred_element_type=jnp.float32)
    y = y + bias_ref[...]
    if has_res:
        y = y + res_ref[...].astype(jnp.float32)
    if relu:
        y = jnp.maximum(y, 0.0)
    o_ref[...] = y.astype(o_ref.dtype)


def _round_up(v, m):
    return ((v + m - 1) // m) * m


def _largest_tile(size, cap=1024):
    """Largest multiple of 128 <= cap dividing `size` (size is a 128-multiple)."""
    if size <= cap:
        return size
    t = cap
    while t >= 128:
        if size % t == 0:
            return t
        t -= 128
    return 128


@functools.partial(jax.jit, static_argnames=("n_out", "relu", "out_dtype"))
def _fused_matmul(a, b_packed, bias_row, res=None, *, n_out, relu=False,
                  out_dtype=jnp.bfloat16):
    """a:[M,K] (any float)  b_packed:[Kp,Np] bf16 (BN scale folded, padded)
    bias_row:[1,Np] f32 (padded)  res:[M,n_out] or None  ->  [M,n_out]."""
    M, K = a.shape
    Kp, Np = b_packed.shape

    Mp = _round_up(max(M, 16), 16)
    if Mp > 512:
        tm = 256
        Mp = _round_up(M, tm)
    else:
        tm = Mp
    tk = _largest_tile(Kp)
    tn = _largest_tile(Np)
    # v7x shards "parallel" grid axes over its two TensorCores: make sure
    # there are at least two parallel tiles whenever the problem allows it.
    if (Mp // tm) * (Np // tn) == 1 and Np % 256 == 0:
        tn = Np // 2

    a_p = jnp.pad(a.astype(jnp.bfloat16), ((0, Mp - M), (0, Kp - K)))

    in_specs = [
        pl.BlockSpec((tm, tk), lambda i, j, k: (i, k)),
        pl.BlockSpec((tk, tn), lambda i, j, k: (k, j)),
        pl.BlockSpec((1, tn), lambda i, j, k: (0, j)),
    ]
    operands = [a_p, b_packed, bias_row]
    has_res = res is not None
    if has_res:
        r_p = jnp.pad(res.astype(jnp.bfloat16), ((0, Mp - M), (0, Np - n_out)))
        in_specs.append(pl.BlockSpec((tm, tn), lambda i, j, k: (i, j)))
        operands.append(r_p)

    kt = Kp // tk
    single_k = kt == 1
    if single_k:
        kernel = functools.partial(_matmul_kernel_single_k,
                                   relu=relu, has_res=has_res)
        scratch = []
    else:
        kernel = functools.partial(_matmul_kernel, relu=relu, has_res=has_res)
        scratch = [pltpu.VMEM((tm, tn), jnp.float32)]

    grid = (Mp // tm, Np // tn, kt)
    out_bytes = Mp * Np * jnp.dtype(out_dtype).itemsize
    cost = pl.CostEstimate(
        flops=2 * Mp * Kp * Np,
        transcendentals=0,
        bytes_accessed=int(2 * (Mp * Kp + Kp * Np + (Mp * Np if has_res else 0))
                           + 4 * Np + out_bytes))

    out = pl.pallas_call(
        kernel,
        out_shape=jax.ShapeDtypeStruct((Mp, Np), out_dtype),
        grid_spec=pltpu.PrefetchScalarGridSpec(
            num_scalar_prefetch=0,
            grid=grid,
            in_specs=in_specs,
            out_specs=pl.BlockSpec((tm, tn), lambda i, j, k: (i, j)),
            scratch_shapes=scratch,
        ),
        compiler_params=pltpu.CompilerParams(
            dimension_semantics=("parallel", "parallel", "arbitrary"),
            vmem_limit_bytes=48 * 1024 * 1024),
        cost_estimate=cost,
    )(*operands)
    # Keep the [:M, :n_out] slice: padded rows/columns contain garbage.
    return out[:M, :n_out]


# ----------------------------------------------------------------------------
# Prepacked parameter container (cout / k are static pytree aux data)
# ----------------------------------------------------------------------------
@jax.tree_util.register_pytree_node_class
class ConvParams:
    def __init__(self, b, bias, cout, k):
        self.b, self.bias, self.cout, self.k = b, bias, cout, k

    def tree_flatten(self):
        return (self.b, self.bias), (self.cout, self.k)

    @classmethod
    def tree_unflatten(cls, aux, children):
        b, bias = children
        return cls(b, bias, *aux)


# ----------------------------------------------------------------------------
# Conv / Linear wrappers (im2col glue in JAX, matmul + epilogue in Pallas)
# ----------------------------------------------------------------------------
def conv2d(x, p, *, stride=1, padding=0, dilation=1, relu=False,
           residual=None, out_dtype=jnp.bfloat16):
    """x: NHWC.  p: ConvParams (prepacked weights, folded BN)."""
    N, H, W, Cin = x.shape
    k, Cout = p.k, p.cout
    Ho = (H + 2 * padding - dilation * (k - 1) - 1) // stride + 1
    Wo = (W + 2 * padding - dilation * (k - 1) - 1) // stride + 1
    if k == 1 and padding == 0:
        xs = x[:, ::stride, ::stride, :] if stride > 1 else x
        a = xs.reshape(N * Ho * Wo, Cin)
    else:
        # TODO(synk): explicit im2col (k*k activation duplication in HBM, built
        # in bf16); a fully in-kernel implicit im2col needs element-offset
        # windows that Blocked BlockSpecs cannot express safely at these shapes.
        xp = x
        if padding:
            xp = jnp.pad(xp, ((0, 0), (padding, padding),
                              (padding, padding), (0, 0)))
        xp = xp.astype(jnp.bfloat16)
        cols = []
        for ky in range(k):
            for kx in range(k):
                y0, x0 = ky * dilation, kx * dilation
                cols.append(xp[:, y0:y0 + (Ho - 1) * stride + 1:stride,
                               x0:x0 + (Wo - 1) * stride + 1:stride, :])
        a = jnp.concatenate(cols, axis=-1).reshape(N * Ho * Wo, k * k * Cin)
    res = residual.reshape(N * Ho * Wo, Cout) if residual is not None else None
    out = _fused_matmul(a, p.b, p.bias, res, n_out=Cout, relu=relu,
                        out_dtype=out_dtype)
    return out.reshape(N, Ho, Wo, Cout)


def linear(x, p):
    return _fused_matmul(x, p.b, p.bias, None, n_out=p.cout,
                         relu=False, out_dtype=jnp.float32)


# ----------------------------------------------------------------------------
# Small glue ops (plain JAX; negligible compute, fused by the outer jit)
# ----------------------------------------------------------------------------
def max_pool_3x3_s2(x):
    init = jnp.array(-jnp.inf, x.dtype)
    return lax.reduce_window(x, init, lax.max, (1, 3, 3, 1), (1, 2, 2, 1),
                             [(0, 0), (1, 1), (1, 1), (0, 0)])


def _pool_matrix(in_size, out_size):
    P = np.zeros((out_size, in_size), np.float32)
    for i in range(out_size):
        s = (i * in_size) // out_size
        e = ((i + 1) * in_size + out_size - 1) // out_size
        P[i, s:e] = 1.0 / (e - s)
    return jnp.asarray(P)


def adaptive_avg_pool(x, out_size):
    _, H, W, _ = x.shape
    Ph, Pw = _pool_matrix(H, out_size), _pool_matrix(W, out_size)
    return jnp.einsum("oh,pw,nhwc->nopc", Ph, Pw, x)


def _bilinear_matrix(in_size, out_size):
    R = np.zeros((out_size, in_size), np.float32)
    for i in range(out_size):
        src = i * (in_size - 1) / (out_size - 1) if out_size > 1 else 0.0
        lo = min(int(np.floor(src)), in_size - 1)
        frac = src - lo
        R[i, lo] += 1.0 - frac
        if frac > 0.0:
            R[i, min(lo + 1, in_size - 1)] += frac
    return jnp.asarray(R)


def resize_bilinear_ac(x, out_h, out_w):
    _, H, W, _ = x.shape
    Rh, Rw = _bilinear_matrix(H, out_h), _bilinear_matrix(W, out_w)
    return jnp.einsum("oh,pw,nhwc->nopc", Rh, Rw, x)


# ----------------------------------------------------------------------------
# Parameter initialization + one-time weight prepacking (deterministic)
# ----------------------------------------------------------------------------
class _KeyGen:
    def __init__(self, key):
        self._key, self._i = key, 0

    def __call__(self):
        self._i += 1
        return jax.random.fold_in(self._key, self._i)


def _pack_gemm(w_kn, scale, bias):
    """Fold BN scale into weight columns, pad K/N to 128-multiples, cast bf16."""
    K, N = w_kn.shape
    Kp, Np = _round_up(K, 128), _round_up(N, 128)
    b = (w_kn.astype(jnp.float32) * scale[None, :].astype(jnp.float32))
    b = jnp.pad(b.astype(jnp.bfloat16), ((0, Kp - K), (0, Np - N)))
    bias_p = jnp.pad(bias.astype(jnp.float32), (0, Np - N)).reshape(1, Np)
    return b, bias_p


def _conv_params(kg, cin, cout, k, *, with_bn=True, conv_bias=None):
    fan_in = cin * k * k
    w = jax.random.normal(kg(), (cout, cin, k, k), jnp.float32) * np.sqrt(2.0 / fan_in)
    if with_bn:
        gamma = jnp.ones((cout,), jnp.float32)
        beta = jnp.zeros((cout,), jnp.float32)
        mean = jnp.zeros((cout,), jnp.float32)
        var = jnp.ones((cout,), jnp.float32)
        eps = 1e-5
        scale = gamma / jnp.sqrt(var + eps)
        bias = beta - mean * scale
    else:
        scale = jnp.ones((cout,), jnp.float32)
        bias = conv_bias if conv_bias is not None else jnp.zeros((cout,), jnp.float32)
    w_kn = jnp.transpose(w, (2, 3, 1, 0)).reshape(k * k * cin, cout)
    b_p, bias_p = _pack_gemm(w_kn, scale, bias)
    return ConvParams(b_p, bias_p, cout, k)


def _linear_params(kg, fin, fout):
    w = jax.random.normal(kg(), (fout, fin), jnp.float32) / np.sqrt(float(fin))
    b = jnp.zeros((fout,), jnp.float32)
    b_p, bias_p = _pack_gemm(jnp.transpose(w), jnp.ones((fout,), jnp.float32), b)
    return ConvParams(b_p, bias_p, fout, 1)


def init_mtnet_params(key, segCla=2, clsCla=2, bins=(1, 2, 3, 6)):
    kg = _KeyGen(key)
    p = {}
    # deep-stem layer0: conv3x3(3,64,s2) + conv3x3(64,64) + conv3x3(64,128)
    p["stem"] = [_conv_params(kg, 3, 64, 3),
                 _conv_params(kg, 64, 64, 3),
                 _conv_params(kg, 64, 128, 3)]

    def make_layer(inplanes, planes, blocks):
        layer = []
        for b in range(blocks):
            cin = inplanes if b == 0 else planes * 4
            blk = {"conv1": _conv_params(kg, cin, planes, 1),
                   "conv2": _conv_params(kg, planes, planes, 3),
                   "conv3": _conv_params(kg, planes, planes * 4, 1)}
            if b == 0:
                blk["down"] = _conv_params(kg, inplanes, planes * 4, 1)
            layer.append(blk)
        return layer

    p["layer1"] = make_layer(128, 64, 3)
    p["layer2"] = make_layer(256, 128, 4)
    p["layer3"] = make_layer(512, 256, 6)
    p["layer4"] = make_layer(1024, 512, 3)

    # classification head
    p["classifier"] = [_conv_params(kg, 2048, 1024, 3),
                       _conv_params(kg, 1024, 512, 3),
                       _conv_params(kg, 512, 512, 3)]
    p["fc"] = _linear_params(kg, 512, clsCla)

    # segmentation head (PPM + cls)
    red = 2048 // len(bins)
    p["ppm"] = [_conv_params(kg, 2048, red, 1) for _ in bins]
    p["cls_head"] = _conv_params(kg, 4096, 512, 3)
    p["seg"] = _conv_params(kg, 512, segCla, 1, with_bn=False)
    return p


# ----------------------------------------------------------------------------
# Forward pass (one jit: task / bins static)
# ----------------------------------------------------------------------------
def bottleneck(x, bp, stride, dilation):
    identity = x
    out = conv2d(x, bp["conv1"], relu=True)
    out = conv2d(out, bp["conv2"], stride=stride, padding=dilation,
                 dilation=dilation, relu=True)
    if "down" in bp:
        identity = conv2d(x, bp["down"], stride=stride)
    out = conv2d(out, bp["conv3"], relu=True, residual=identity)
    return out


def run_layer(x, layer, stride, dilation):
    for i, bp in enumerate(layer):
        x = bottleneck(x, bp, stride if i == 0 else 1, dilation)
    return x


@functools.partial(jax.jit, static_argnames=("task", "bins"))
def mtnet_forward(params, x_nchw, task="MTonP", bins=(1, 2, 3, 6)):
    assert task in ("singleCls", "singleSeg", "MTwoP", "MTonP")
    N, C, H, W = x_nchw.shape
    assert H % 8 == 0 and W % 8 == 0
    x = jnp.transpose(x_nchw, (0, 2, 3, 1)).astype(jnp.bfloat16)  # NHWC, bf16

    s0, s1, s2 = params["stem"]
    x = conv2d(x, s0, stride=2, padding=1, relu=True)
    x = conv2d(x, s1, stride=1, padding=1, relu=True)
    x = conv2d(x, s2, stride=1, padding=1, relu=True)
    x = max_pool_3x3_s2(x)

    x = run_layer(x, params["layer1"], stride=1, dilation=1)
    x = run_layer(x, params["layer2"], stride=2, dilation=1)
    x = run_layer(x, params["layer3"], stride=1, dilation=2)   # dilated, stride 1
    x_tmp = run_layer(x, params["layer4"], stride=1, dilation=4)

    x_seg = x_seg_tmp = x_cls = None
    if task != "singleCls":
        h, w = (H // 8) * 8, (W // 8) * 8
        hh, ww = x_tmp.shape[1], x_tmp.shape[2]
        feats = [x_tmp]
        for bn_, pp in zip(bins, params["ppm"]):
            pooled = adaptive_avg_pool(x_tmp, bn_)
            pooled = conv2d(pooled, pp, relu=True)
            feats.append(resize_bilinear_ac(pooled, hh, ww).astype(jnp.bfloat16))
        cat = jnp.concatenate(feats, axis=-1)                   # 4096 channels
        y = conv2d(cat, params["cls_head"], padding=1, relu=True)
        # TODO(synk): Dropout2d(p=0.1) is identity in eval mode; training-mode
        # channel dropout is not implemented here.
        x_seg_tmp = conv2d(y, params["seg"], out_dtype=jnp.float32)
        x_seg = resize_bilinear_ac(x_seg_tmp, h, w)
        x_seg = jnp.transpose(x_seg, (0, 3, 1, 2))              # NCHW out

    if task == "MTonP":
        x_soft = jax.nn.softmax(x_seg_tmp, axis=-1)
        prob = x_soft[..., 1:2]
        x_tmp = x_tmp.astype(jnp.float32) * prob

    if task != "singleSeg":
        c0, c1, c2 = params["classifier"]
        y = conv2d(x_tmp, c0, stride=2, padding=1, relu=True)
        y = conv2d(y, c1, stride=2, padding=1, relu=True)
        y = conv2d(y, c2, stride=2, padding=1, relu=True)
        y = jnp.mean(y.astype(jnp.float32), axis=(1, 2))        # AdaptiveAvgPool2d(1)
        x_cls = linear(y, params["fc"])

    if task == "singleSeg":
        return x_seg
    if task == "singleCls":
        return x_cls
    return (x_seg, x_cls)


# ----------------------------------------------------------------------------
if __name__ == "__main__":
    key = jax.random.PRNGKey(0)
    params = init_mtnet_params(key, segCla=2, clsCla=2, bins=(1, 2, 3, 6))
    x = jax.random.normal(jax.random.fold_in(key, 12345), (2, 3, 16, 16), jnp.float32)

    x_seg, x_cls = mtnet_forward(params, x, task="MTonP", bins=(1, 2, 3, 6))
    (x_seg, x_cls) = jax.block_until_ready((x_seg, x_cls))

    assert x_seg.shape == (2, 2, 16, 16), x_seg.shape
    assert x_cls.shape == (2, 2), x_cls.shape
    assert bool(jnp.all(jnp.isfinite(x_seg))) and bool(jnp.all(jnp.isfinite(x_cls)))
    print("KERNEL_OK")
</pallas_src>

<mosaic_0001>
module attributes {stable_mosaic.version = 11 : i64} {
  func.func @_matmul_kernel_single_k(%arg0: i32, %arg1: i32, %arg2: i32, %arg3: memref<128x128xbf16, #tpu.memory_space<vmem>>, %arg4: memref<128x128xbf16, #tpu.memory_space<vmem>>, %arg5: memref<1x128xf32, #tpu.memory_space<vmem>>, %arg6: memref<128x128xbf16, #tpu.memory_space<vmem>>) attributes {dimension_semantics = [#tpu.dimension_semantics<parallel>, #tpu.dimension_semantics<parallel>, #tpu.dimension_semantics<arbitrary>], iteration_bounds = array<i64: 1, 1, 1>, scalar_prefetch = 0 : i64, scratch_operands = 0 : i64, tpu.core_type = #tpu.core_type<tc>, window_params = [{transform_indices = @transform_0, window_bounds = array<i64: 128, 128>}, {transform_indices = @transform_1, window_bounds = array<i64: 128, 128>}, {transform_indices = @transform_2, window_bounds = array<i64: 1, 128>}, {transform_indices = @transform_3, window_bounds = array<i64: 128, 128>}]} {
    %c0 = arith.constant 0 : index
    %c0_0 = arith.constant 0 : index
    %0 = vector.load %arg3[%c0, %c0_0] : memref<128x128xbf16, #tpu.memory_space<vmem>>, vector<128x128xbf16>
    %c0_1 = arith.constant 0 : index
    %c0_2 = arith.constant 0 : index
    %1 = vector.load %arg4[%c0_1, %c0_2] : memref<128x128xbf16, #tpu.memory_space<vmem>>, vector<128x128xbf16>
    %cst = arith.constant dense<0.000000e+00> : vector<128x128xf32>
    %2 = tpu.matmul %0, %1, %cst {dimension_numbers = #tpu.dot_dimension_numbers<[1], [0], [0], [1], [0, 0, 1, 1], [], []>} : vector<128x128xbf16>, vector<128x128xbf16>, vector<128x128xf32> -> vector<128x128xf32>
    %c0_3 = arith.constant 0 : index
    %c0_4 = arith.constant 0 : index
    %3 = vector.load %arg5[%c0_3, %c0_4] : memref<1x128xf32, #tpu.memory_space<vmem>>, vector<1x128xf32>
    %4 = vector.broadcast %3 : vector<1x128xf32> to vector<128x128xf32>
    %5 = arith.addf %2, %4 : vector<128x128xf32>
    %cst_5 = arith.constant 0.000000e+00 : f32
    %6 = vector.broadcast %cst_5 : f32 to vector<128x128xf32>
    %7 = arith.maximumf %5, %6 : vector<128x128xf32>
    %8 = arith.truncf %7 : vector<128x128xf32> to vector<128x128xbf16>
    %c0_6 = arith.constant 0 : index
    %c0_7 = arith.constant 0 : index
    %9 = vector.load %arg6[%c0_6, %c0_7] : memref<128x128xbf16, #tpu.memory_space<vmem>>, vector<128x128xbf16>
    tpu.vector_store %arg6[%c0_6, %c0_7], %8 {strides = array<i32>} : memref<128x128xbf16, #tpu.memory_space<vmem>>, vector<128x128xbf16>,
    return
  }
  func.func @transform_0(%arg0: i32, %arg1: i32, %arg2: i32) -> (i32, i32) {
    %c0_i32 = arith.constant 0 : i32
    return %arg0, %arg2 : i32, i32
  }
  func.func @transform_1(%arg0: i32, %arg1: i32, %arg2: i32) -> (i32, i32) {
    %c0_i32 = arith.constant 0 : i32
    return %arg2, %arg1 : i32, i32
  }
  func.func @transform_2(%arg0: i32, %arg1: i32, %arg2: i32) -> (i32, i32) {
    %c0_i32 = arith.constant 0 : i32
    %c0_i32_0 = arith.constant 0 : i32
    return %c0_i32, %arg1 : i32, i32
  }
  func.func @transform_3(%arg0: i32, %arg1: i32, %arg2: i32) -> (i32, i32) {
    %c0_i32 = arith.constant 0 : i32
    return %arg0, %arg1 : i32, i32
  }
}

</mosaic_0001>

<llo_original>
// kernel: _fused_matmul.1
$region0: #{_fused_matmul.1}
  #allocation0 [shape = 'u32[]', space=smem, size = 0x4, offset = 0x4, fixed_abs, tag = 'smem constant byte address 0x4 - core index']
  #allocation1 [shape = 'u32[144,128]{1,0:T(1,128)}', space=vmem, size = 0x12000, scoped, tag = 'internal scratch']
  %s0 = inlined_call_operand.vmem [shape: bf16[128,128], index: 0, kind: input, shape index: {}]
  %s1 = inlined_call_operand.vmem [shape: bf16[128,128], index: 1, kind: input, shape index: {}]
  %s2 = inlined_call_operand.vmem [shape: f32[1,128], index: 2, kind: input, shape index: {}]
  %s3 = inlined_call_operand.vmem [shape: bf16[128,128], index: 3, kind: output, shape index: {}]
  %s4 = sld [smem:[#allocation0]]
  $region22: #{_fused_matmul.1} parent=0
    _
  %s6 = ssub.s32 1, %s4
  %s7 = scalar_select 0, %s6, %s4
  // Predicated region
  $region2: #{_fused_matmul.1} parent=0 // pred_check
    _
  $region3: #{_fused_matmul.1} parent=0 // pred_check_branch
    %9 = sbr.rel (0) target = $region5
  $region4: #{_fused_matmul.1} parent=0 // pred_region
    _
  $region5: #{_fused_matmul.1} parent=0 // pred_fallthru
    _
  // Predicated region
  $region6: #{_fused_matmul.1} parent=0 // pred_check
    _
  $region7: #{_fused_matmul.1} parent=0 // pred_check_branch
    %11 = sbr.rel (0) target = $region9
  $region8: #{_fused_matmul.1} parent=0 // pred_region
    _
  $region9: #{_fused_matmul.1} parent=0 // pred_fallthru
    _
  // Predicated region
  $region10: #{_fused_matmul.1} parent=0 // pred_check
    _
  $region11: #{_fused_matmul.1} parent=0 // pred_check_branch
    %13 = sbr.rel (0) target = $region13
  $region12: #{_fused_matmul.1} parent=0 // pred_region
    _
  $region13: #{_fused_matmul.1} parent=0 // pred_fallthru
    _
  %v15 = vld [vmem:[%s0] sm:$0xf]
  %v16 = vld [vmem:[%s0 + $0x4] sm:$0xf]
  %v17 = vld [vmem:[%s0 + $0x8] sm:$0xf]
  %v18 = vld [vmem:[%s0 + $0xc] sm:$0xf]
  %v19 = vld [vmem:[%s0 + $0x10] sm:$0xf]
  %v20 = vld [vmem:[%s0 + $0x14] sm:$0xf]
  %v21 = vld [vmem:[%s0 + $0x18] sm:$0xf]
  %v22 = vld [vmem:[%s0 + $0x1c] sm:$0xf]
  %v23 = vld [vmem:[%s0 + $0x20] sm:$0xf]
  %v24 = vld [vmem:[%s0 + $0x24] sm:$0xf]
  %v25 = vld [vmem:[%s0 + $0x28] sm:$0xf]
  %v26 = vld [vmem:[%s0 + $0x2c] sm:$0xf]
  %v27 = vld [vmem:[%s0 + $0x30] sm:$0xf]
  %v28 = vld [vmem:[%s0 + $0x34] sm:$0xf]
  %v29 = vld [vmem:[%s0 + $0x38] sm:$0xf]
  %v30 = vld [vmem:[%s0 + $0x3c] sm:$0xf]
  %v31 = vld [vmem:[%s1] sm:$0xf]
  %v32 = vld [vmem:[%s1 + $0x4] sm:$0xf]
  %v33 = vld [vmem:[%s1 + $0x8] sm:$0xf]
  %v34 = vld [vmem:[%s1 + $0xc] sm:$0xf]
  %v35 = vld [vmem:[%s1 + $0x10] sm:$0xf]
  %v36 = vld [vmem:[%s1 + $0x14] sm:$0xf]
  %v37 = vld [vmem:[%s1 + $0x18] sm:$0xf]
  %v38 = vld [vmem:[%s1 + $0x1c] sm:$0xf]
  %v39 = vld [vmem:[%s1 + $0x20] sm:$0xf]
  %v40 = vld [vmem:[%s1 + $0x24] sm:$0xf]
  %v41 = vld [vmem:[%s1 + $0x28] sm:$0xf]
  %v42 = vld [vmem:[%s1 + $0x2c] sm:$0xf]
  %v43 = vld [vmem:[%s1 + $0x30] sm:$0xf]
  %v44 = vld [vmem:[%s1 + $0x34] sm:$0xf]
  %v45 = vld [vmem:[%s1 + $0x38] sm:$0xf]
  %v46 = vld [vmem:[%s1 + $0x3c] sm:$0xf]
  %v47 = vld [vmem:[%s2] sm:$0x1]
  %v49 = vlaneseq
  %v50 = vshrl.u32 %v49, 7
  %v51 = vsub.s32 0, %v50
  %v52 = vrot.slane %v47, %v51
  %v70 = vunpack.c.l.b16 %v15
  %v71 = vunpack.c.l.b16 %v16
  %v72 = vunpack.c.l.b16 %v17
  %v73 = vunpack.c.l.b16 %v18
  %v74 = vunpack.c.l.b16 %v19
  %v75 = vunpack.c.l.b16 %v20
  %v76 = vunpack.c.l.b16 %v21
  %v77 = vunpack.c.l.b16 %v22
  %v78 = vunpack.c.l.b16 %v23
  %v79 = vunpack.c.l.b16 %v24
  %v80 = vunpack.c.l.b16 %v25
  %v81 = vunpack.c.l.b16 %v26
  %v82 = vunpack.c.l.b16 %v27
  %v83 = vunpack.c.l.b16 %v28
  %v84 = vunpack.c.l.b16 %v29
  %v85 = vunpack.c.l.b16 %v30
  %v86 = vpack.c.b16 %v71, %v70
  %v87 = vpack.c.b16 %v73, %v72
  %v88 = vpack.c.b16 %v75, %v74
  %v89 = vpack.c.b16 %v77, %v76
  %v90 = vpack.c.b16 %v79, %v78
  %v91 = vpack.c.b16 %v81, %v80
  %v92 = vpack.c.b16 %v83, %v82
  %v93 = vpack.c.b16 %v85, %v84
  %v118 = vunpack.c.l.b16 %v31
  %v119 = vunpack.c.l.b16 %v32
  %v120 = vunpack.c.l.b16 %v33
  %v121 = vunpack.c.l.b16 %v34
  %v122 = vunpack.c.l.b16 %v35
  %v123 = vunpack.c.l.b16 %v36
  %v124 = vunpack.c.l.b16 %v37
  %v125 = vunpack.c.l.b16 %v38
  %v126 = vunpack.c.l.b16 %v39
  %v127 = vunpack.c.l.b16 %v40
  %v128 = vunpack.c.l.b16 %v41
  %v129 = vunpack.c.l.b16 %v42
  %v130 = vunpack.c.l.b16 %v43
  %v131 = vunpack.c.l.b16 %v44
  %v132 = vunpack.c.l.b16 %v45
  %v133 = vunpack.c.l.b16 %v46
  %v134 = vpack.c.b16 %v119, %v118
  %v135 = vpack.c.b16 %v121, %v120
  %v136 = vpack.c.b16 %v123, %v122
  %v137 = vpack.c.b16 %v125, %v124
  %v138 = vpack.c.b16 %v127, %v126
  %v139 = vpack.c.b16 %v129, %v128
  %v140 = vpack.c.b16 %v131, %v130
  %v141 = vpack.c.b16 %v133, %v132
  %150 = vmatprep.subr.bf16.mxu0 0
  %151 = vmatpush1.bf16.msra.mxu0 %v134
  %152 = vmatprep.subr.bf16.mxu0 0
  %153 = vmatpush1.bf16.msra.mxu0 %v135
  %154 = vmatprep.subr.bf16.mxu0 0
  %155 = vmatpush1.bf16.msra.mxu0 %v136
  %156 = vmatprep.subr.bf16.mxu0 0
  %157 = vmatpush1.bf16.msra.mxu0 %v137
  %158 = vmatprep.subr.bf16.mxu0 0
  %159 = vmatpush1.bf16.msra.mxu0 %v138
  %160 = vmatprep.subr.bf16.mxu0 0
  %161 = vmatpush1.bf16.msra.mxu0 %v139
  %162 = vmatprep.subr.bf16.mxu0 0
  %163 = vmatpush1.bf16.msra.mxu0 %v140
  %164 = vmatprep.subr.bf16.mxu0 0
  %165 = vmatpush1.bf16.msra.mxu0 %v141
  %166 = vmatprep.subr.bf16.mxu0 0
  %167 = vmatpush1.bf16.msra.mxu0 0
  %168 = vmatprep.subr.bf16.mxu0 0
  %169 = vmatpush1.bf16.msra.mxu0 0
  %170 = vmatprep.subr.bf16.mxu0 0
  %171 = vmatpush1.bf16.msra.mxu0 0
  %172 = vmatprep.subr.bf16.mxu0 0
  %173 = vmatpush1.bf16.msra.mxu0 0
  %174 = vmatprep.subr.bf16.mxu0 0
  %175 = vmatpush1.bf16.msra.mxu0 0
  %176 = vmatprep.subr.bf16.mxu0 0
  %177 = vmatpush1.bf16.msra.mxu0 0
  %178 = vmatprep.subr.bf16.mxu0 0
  %179 = vmatpush1.bf16.msra.mxu0 0
  %180 = vmatprep.subr.bf16.mxu0 0
  %181 = vmatpush1.bf16.msra.mxu0 0
  %182 = vmatprep.mubr.bf16.mxu0 0
  %183 = vmatmul.mubr.bf16.gmra.mrb[0].mxu0 %v86
  %v184 = vpop.f32.mrb[0].mxu0
  %v185 = vadd.f32 %v52, %v184
  %v186 = vpop.f32.mrb[0].mxu0
  %v187 = vpop.f32.mrb[0].mxu0
  %v188 = vadd.f32 %v52, %v187
  %v189 = vpop.f32.mrb[0].mxu0
  %190 = vmatprep.mubr.bf16.mxu0 0
  %191 = vmatmul.mubr.bf16.gmra.mrb[0].mxu0 %v87
  %v192 = vpop.f32.mrb[0].mxu0
  %v193 = vadd.f32 %v52, %v192
  %v194 = vpop.f32.mrb[0].mxu0
  %v195 = vpop.f32.mrb[0].mxu0
  %v196 = vadd.f32 %v52, %v195
  %v197 = vpop.f32.mrb[0].mxu0
  %198 = vmatprep.mubr.bf16.mxu0 0
  %199 = vmatmul.mubr.bf16.gmra.mrb[0].mxu0 %v88
  %v200 = vpop.f32.mrb[0].mxu0
  %v201 = vadd.f32 %v52, %v200
  %v202 = vpop.f32.mrb[0].mxu0
  %v203 = vpop.f32.mrb[0].mxu0
  %v204 = vadd.f32 %v52, %v203
  %v205 = vpop.f32.mrb[0].mxu0
  %206 = vmatprep.mubr.bf16.mxu0 0
  %207 = vmatmul.mubr.bf16.gmra.mrb[0].mxu0 %v89
  %v208 = vpop.f32.mrb[0].mxu0
  %v209 = vadd.f32 %v52, %v208
  %v210 = vpop.f32.mrb[0].mxu0
  %v211 = vpop.f32.mrb[0].mxu0
  %v212 = vadd.f32 %v52, %v211
  %v213 = vpop.f32.mrb[0].mxu0
  %214 = vmatprep.mubr.bf16.mxu0 0
  %215 = vmatmul.mubr.bf16.gmra.mrb[0].mxu0 %v90
  %v216 = vpop.f32.mrb[0].mxu0
  %v217 = vadd.f32 %v52, %v216
  %v218 = vpop.f32.mrb[0].mxu0
  %v219 = vpop.f32.mrb[0].mxu0
  %v220 = vadd.f32 %v52, %v219
  %v221 = vpop.f32.mrb[0].mxu0
  %222 = vmatprep.mubr.bf16.mxu0 0
  %223 = vmatmul.mubr.bf16.gmra.mrb[0].mxu0 %v91
  %v224 = vpop.f32.mrb[0].mxu0
  %v225 = vadd.f32 %v52, %v224
  %v226 = vpop.f32.mrb[0].mxu0
  %v227 = vpop.f32.mrb[0].mxu0
  %v228 = vadd.f32 %v52, %v227
  %v229 = vpop.f32.mrb[0].mxu0
  %230 = vmatprep.mubr.bf16.mxu0 0
  %231 = vmatmul.mubr.bf16.gmra.mrb[0].mxu0 %v92
  %v232 = vpop.f32.mrb[0].mxu0
  %v233 = vadd.f32 %v52, %v232
  %v234 = vpop.f32.mrb[0].mxu0
  %v235 = vpop.f32.mrb[0].mxu0
  %v236 = vadd.f32 %v52, %v235
  %v237 = vpop.f32.mrb[0].mxu0
  %238 = vmatprep.mubr.bf16.mxu0 0
  %239 = vmatmul.mubr.bf16.gmra.mrb[0].mxu0 %v93
  %v240 = vpop.f32.mrb[0].mxu0
  %v241 = vadd.f32 %v52, %v240
  %v242 = vpop.f32.mrb[0].mxu0
  %v243 = vpop.f32.mrb[0].mxu0
  %v244 = vadd.f32 %v52, %v243
  %v245 = vpop.f32.mrb[0].mxu0
  %246 = vdwg.mxu0
  %v247 = vmax.f32 %v185, 0.0
  %v248 = vmax.f32 %v188, 0.0
  %v249 = vmax.f32 %v193, 0.0
  %v250 = vmax.f32 %v196, 0.0
  %v251 = vmax.f32 %v201, 0.0
  %v252 = vmax.f32 %v204, 0.0
  %v253 = vmax.f32 %v209, 0.0
  %v254 = vmax.f32 %v212, 0.0
  %v255 = vmax.f32 %v217, 0.0
  %v256 = vmax.f32 %v220, 0.0
  %v257 = vmax.f32 %v225, 0.0
  %v258 = vmax.f32 %v228, 0.0
  %v259 = vmax.f32 %v233, 0.0
  %v260 = vmax.f32 %v236, 0.0
  %v261 = vmax.f32 %v241, 0.0
  %v262 = vmax.f32 %v244, 0.0
  %v263 = vpack.c.bf16 %v248, %v247
  %v264 = vpack.c.bf16 %v250, %v249
  %v265 = vpack.c.bf16 %v252, %v251
  %v266 = vpack.c.bf16 %v254, %v253
  %v267 = vpack.c.bf16 %v256, %v255
  %v268 = vpack.c.bf16 %v258, %v257
  %v269 = vpack.c.bf16 %v260, %v259
  %v270 = vpack.c.bf16 %v262, %v261
  %v279 = vunpack.c.l.b16 %v263
  %v280 = vunpack.c.h.b16 %v263
  %v281 = vunpack.c.l.b16 %v264
  %v282 = vunpack.c.h.b16 %v264
  %v283 = vunpack.c.l.b16 %v265
  %v284 = vunpack.c.h.b16 %v265
  %v285 = vunpack.c.l.b16 %v266
  %v286 = vunpack.c.h.b16 %v266
  %v287 = vunpack.c.l.b16 %v267
  %v288 = vunpack.c.h.b16 %v267
  %v289 = vunpack.c.l.b16 %v268
  %v290 = vunpack.c.h.b16 %v268
  %v291 = vunpack.c.l.b16 %v269
  %v292 = vunpack.c.h.b16 %v269
  %v293 = vunpack.c.l.b16 %v270
  %v294 = vunpack.c.h.b16 %v270
  %v295 = vpack.c.b16 %v279, %v279
  %v296 = vpack.c.b16 %v280, %v280
  %v297 = vpack.c.b16 %v281, %v281
  %v298 = vpack.c.b16 %v282, %v282
  %v299 = vpack.c.b16 %v283, %v283
  %v300 = vpack.c.b16 %v284, %v284
  %v301 = vpack.c.b16 %v285, %v285
  %v302 = vpack.c.b16 %v286, %v286
  %v303 = vpack.c.b16 %v287, %v287
  %v304 = vpack.c.b16 %v288, %v288
  %v305 = vpack.c.b16 %v289, %v289
  %v306 = vpack.c.b16 %v290, %v290
  %v307 = vpack.c.b16 %v291, %v291
  %v308 = vpack.c.b16 %v292, %v292
  %v309 = vpack.c.b16 %v293, %v293
  %v310 = vpack.c.b16 %v294, %v294
  %327 = vst [vmem:[%s3] sm:$0xf] %v295
  %328 = vst [vmem:[%s3 + $0x4] sm:$0xf] %v296
  %329 = vst [vmem:[%s3 + $0x8] sm:$0xf] %v297
  %330 = vst [vmem:[%s3 + $0xc] sm:$0xf] %v298
  %331 = vst [vmem:[%s3 + $0x10] sm:$0xf] %v299
  %332 = vst [vmem:[%s3 + $0x14] sm:$0xf] %v300
  %333 = vst [vmem:[%s3 + $0x18] sm:$0xf] %v301
  %334 = vst [vmem:[%s3 + $0x1c] sm:$0xf] %v302
  %335 = vst [vmem:[%s3 + $0x20] sm:$0xf] %v303
  %336 = vst [vmem:[%s3 + $0x24] sm:$0xf] %v304
  %337 = vst [vmem:[%s3 + $0x28] sm:$0xf] %v305
  %338 = vst [vmem:[%s3 + $0x2c] sm:$0xf] %v306
  %339 = vst [vmem:[%s3 + $0x30] sm:$0xf] %v307
  %340 = vst [vmem:[%s3 + $0x34] sm:$0xf] %v308
  %341 = vst [vmem:[%s3 + $0x38] sm:$0xf] %v309
  %342 = vst [vmem:[%s3 + $0x3c] sm:$0xf] %v310
  // Predicated region
  $region14: #{_fused_matmul.1} parent=0 // pred_check
    _
  $region15: #{_fused_matmul.1} parent=0 // pred_check_branch
    %344 = sbr.rel (0) target = $region17
  $region16: #{_fused_matmul.1} parent=0 // pred_region
    _
  $region17: #{_fused_matmul.1} parent=0 // pred_fallthru
    _
  // Predicated region
  $region18: #{_fused_matmul.1} parent=0 // pred_check
    _
  $region19: #{_fused_matmul.1} parent=0 // pred_check_branch
    %346 = sbr.rel (0) target = $region21
  $region20: #{_fused_matmul.1} parent=0 // pred_region
    _
  $region21: #{_fused_matmul.1} parent=0 // pred_fallthru
    _

</llo_original>
